<compile_context>
chip_gen: v7x
topology: tpu7x:2x2x1
jax: 0.10.0
libtpu: 0.0.40
codegen_flags: <defaults>
</compile_context>

<pallas_src>
import math

import jax
import jax.numpy as jnp
from jax.experimental import pallas as pl
from jax.experimental.pallas import tpu as pltpu


def _make_cam_kernel(n_valid: int, mm_dtype):
    """Kernel factory. `n_valid` is the ORIGINAL (un-padded) N = H*W."""
    inv_n = 1.0 / float(n_valid)
    sigma_scale = 1.0 / (float(n_valid) * math.sqrt(float(n_valid)))

    def kernel(params_ref, x_ref, o_ref, energy_acc, s_acc, attn_ref):
        # params_ref : SMEM (2,) f32 -> [gamma, beta]      (scalar prefetch)
        # x_ref      : VMEM (Bb, C, tn) input tile         (native dtype)
        # o_ref      : VMEM (Bb, C, tn) output tile
        # energy_acc : VMEM (Bb, C, C) f32 scratch  (Q @ Q^T accumulator)
        # s_acc      : VMEM (Bb, C)    f32 scratch  (row-sum accumulator)
        # attn_ref   : VMEM (Bb, C, C) f32 scratch  (attention matrix)
        p = pl.program_id(1)          # phase: 0 = accumulate stats, 1 = apply attention
        t = pl.program_id(2)          # N-tile index
        gamma = params_ref[0]
        beta = params_ref[1]

        @pl.when((p == 0) & (t == 0))
        def _():
            energy_acc[...] = jnp.zeros_like(energy_acc)
            s_acc[...] = jnp.zeros_like(s_acc)

        @pl.when(p == 0)
        def _():
            q = x_ref[...]                                   # (Bb, C, tn) native dtype
            qm = q.astype(mm_dtype)
            # energy += Q_t @ Q_t^T, contracting over N directly (no transpose copy).
            energy_acc[...] += jnp.einsum(
                "bcn,bdn->bcd", qm, qm, preferred_element_type=jnp.float32
            )
            s_acc[...] += jnp.sum(q.astype(jnp.float32), axis=2)

        @pl.when((p == 1) & (t == 0))
        def _():
            energy = energy_acc[...]                         # (Bb, C, C) f32
            s = s_acc[...]                                   # (Bb, C)    f32
            # sigma = (Q @ ave_I @ Q^T) / sqrt(N)
            #       = (energy - outer(s, s) / N) / (N * sqrt(N))
            sigma = (energy - s[:, :, None] * s[:, None, :] * inv_n) * sigma_scale

            def softmax_from_shifted(z):
                # z already shifted so its row max is <= 0 (numerically safe exp).
                e = jnp.exp(z)
                denom = jnp.sum(e, axis=-1, keepdims=True)
                return e * pl.reciprocal(denom, approx=True)

            sig_sm = softmax_from_shifted(
                sigma - jnp.max(sigma, axis=-1, keepdims=True)
            )
            # softmax(max_energy - energy) == softmax(-energy); shift by the row MIN so
            # only ONE cross-lane reduction is needed.
            en_sm = softmax_from_shifted(
                jnp.min(energy, axis=-1, keepdims=True) - energy
            )
            attn_ref[...] = beta * sig_sm + (1.0 - beta) * en_sm

        @pl.when(p == 1)
        def _():
            q = x_ref[...]
            out = jnp.einsum(
                "bcd,bdn->bcn",
                attn_ref[...].astype(mm_dtype),
                q.astype(mm_dtype),
                preferred_element_type=jnp.float32,
            )                                                # (Bb, C, tn) f32
            o_ref[...] = (gamma * out + q.astype(jnp.float32)).astype(o_ref.dtype)

    return kernel


def _tpu_vmem_info():
    """Generation-aware VMEM budgets (v5e/v6e: 128 MiB, 1 TC; v7x: 64 MiB, 2 TCs)."""
    try:
        phys = int(pltpu.get_tpu_info().vmem_capacity_bytes)
    except Exception:  # pragma: no cover - conservative fallback
        phys = 128 << 20
    two_cores = phys <= (96 << 20)          # v7x-class chips have 64 MiB per TensorCore
    block_budget = max(min(phys // 3, 48 << 20), 8 << 20)
    vmem_limit = max(min(phys * 3 // 4, 100 << 20), 32 << 20)
    return block_budget, int(vmem_limit), two_cores


def _choose_tiling(B, C, n_pad, in_itemsize, mm_itemsize, block_budget, two_cores,
                   max_n_tile=None):
    """Pick (batch block Bb, N tile tn). Prefers the resident case (tn == n_pad)."""

    def cost(bb, tn):
        blocks = 4 * bb * C * tn * in_itemsize     # double-buffered in + out blocks
        out_f32 = bb * C * tn * 4                  # f32 second-matmul result
        mm_copy = bb * C * tn * mm_itemsize        # cast of the q tile for the MXU
        cc_f32 = 8 * bb * C * C * 4                # energy/sigma/exp/attention temps + scratch
        misc = bb * C * 4                          # row-sum accumulator
        return blocks + out_f32 + mm_copy + cc_f32 + misc

    # Candidate N tiles: full padded N first (resident), then multiples of 128 that
    # evenly divide it (streamed), largest first. Keep tiles >= 512 lanes when possible.
    tn_cands = []
    if max_n_tile is None or n_pad <= max_n_tile:
        tn_cands.append(n_pad)
    for k in range(n_pad // 128, 0, -1):
        tn = k * 128
        if tn >= n_pad or n_pad % tn != 0:
            continue
        if max_n_tile is not None and tn > max_n_tile:
            continue
        tn_cands.append(tn)
    if not tn_cands:
        tn_cands = [n_pad]

    divisors = [d for d in range(1, B + 1) if B % d == 0]
    for tn in tn_cands:
        fitting = [bb for bb in divisors if cost(bb, tn) <= block_budget]
        if not fitting:
            continue
        if two_cores:
            # Prefer an even number of grid steps on the "parallel" batch axis so the
            # two TensorCores stay balanced.
            even = [bb for bb in fitting if (B // bb) % 2 == 0]
            if even:
                bb = max(even)
                return bb, tn
        bb = max(fitting)
        return bb, tn

    # Even (bb=1, tn=128) exceeds the budget => C itself is very large.
    # TODO(synk): tile the channel axis (block the C x C attention) for this regime.
    return 1, tn_cands[-1]


def multi_order_cam(x, gamma, beta, *, precision="bf16", max_n_tile=None):
    """Forward pass of Multi_Order_CAM_Module.

    x: (B, C, H, W). gamma/beta: scalar parameters (python floats, 0-d or (1,) arrays).
    precision: "bf16" routes f32 inputs through the native bf16 MXU path (softmax math
               and accumulation stay f32); "highest"/"float32" keeps the input dtype.
    max_n_tile: optional cap on the N tile; forces the streamed path (mainly for tests).
    """
    B, C, H, W = x.shape
    N = H * W
    x_flat = x.reshape(B, C, N)

    # Pad N to a multiple of 128 for lane-dense, unmasked stores. Zero columns are
    # mathematically inert (energy, s and the kept output columns are unchanged).
    # TODO(synk): replace with a masked store on the last N tile when N % 128 != 0 to
    #             avoid this extra HBM round-trip.
    n_pad = ((N + 127) // 128) * 128
    if n_pad != N:
        x_flat = jnp.pad(x_flat, ((0, 0), (0, 0), (0, n_pad - N)))

    in_dtype = x_flat.dtype
    if in_dtype == jnp.bfloat16:
        mm_dtype = jnp.bfloat16
    elif precision in ("bf16", "bfloat16") and in_dtype == jnp.float32:
        mm_dtype = jnp.bfloat16
    else:
        mm_dtype = in_dtype

    block_budget, vmem_limit, two_cores = _tpu_vmem_info()
    bb, tn = _choose_tiling(
        B, C, n_pad,
        jnp.dtype(in_dtype).itemsize, jnp.dtype(mm_dtype).itemsize,
        block_budget, two_cores, max_n_tile,
    )
    nt = n_pad // tn
    grid = (B // bb, 2, nt)

    gamma = jnp.asarray(gamma, jnp.float32).reshape(())
    beta = jnp.asarray(beta, jnp.float32).reshape(())
    params = jnp.stack([gamma, beta])

    kernel = _make_cam_kernel(N, mm_dtype)

    out_flat = pl.pallas_call(
        kernel,
        out_shape=jax.ShapeDtypeStruct((B, C, n_pad), in_dtype),
        grid_spec=pltpu.PrefetchScalarGridSpec(
            num_scalar_prefetch=1,
            grid=grid,
            in_specs=[pl.BlockSpec((bb, C, tn), lambda b, p, t, prm: (b, 0, t))],
            # Phase 0 pins the output to block (b, 0) and never writes it, so every
            # output tile is written back to HBM exactly once (with the phase-1 result).
            out_specs=pl.BlockSpec((bb, C, tn), lambda b, p, t, prm: (b, 0, p * t)),
            scratch_shapes=[
                pltpu.VMEM((bb, C, C), jnp.float32),   # energy accumulator
                pltpu.VMEM((bb, C), jnp.float32),      # row-sum accumulator
                pltpu.VMEM((bb, C, C), jnp.float32),   # attention matrix
            ],
        ),
        compiler_params=pltpu.CompilerParams(
            dimension_semantics=("parallel", "arbitrary", "arbitrary"),
            vmem_limit_bytes=vmem_limit,
        ),
    )(params, x_flat)

    if n_pad != N:
        out_flat = out_flat[:, :, :N]
    return out_flat.reshape(B, C, H, W)


def _reference(x, gamma, beta):
    """Pure-JAX reference mirroring the PyTorch forward (explicit ave_I)."""
    B, C, H, W = x.shape
    N = H * W
    q = x.reshape(B, C, N).astype(jnp.float32)
    k = jnp.swapaxes(q, 1, 2)
    ave_i = (jnp.eye(N, dtype=jnp.float32) - 1.0 / N) / N
    sigma = jnp.einsum("bcn,nm->bcm", q, ave_i)
    sigma = jnp.einsum("bcm,bmd->bcd", sigma, k) / math.sqrt(N)
    energy = jnp.einsum("bcn,bnd->bcd", q, k)
    energy_new = jnp.max(energy, axis=-1, keepdims=True) - energy
    attn = beta * jax.nn.softmax(sigma, axis=-1) + (1.0 - beta) * jax.nn.softmax(
        energy_new, axis=-1
    )
    out = jnp.einsum("bcd,bdn->bcn", attn, q).reshape(B, C, H, W)
    return gamma * out + x


if __name__ == "__main__":
    key = jax.random.PRNGKey(0)
    B, C, H, W = 2, 4, 16, 16
    # Moderate scale keeps the energy softmax smooth enough that the bf16 MXU path stays
    # close to the f32 reference.
    x = 0.25 * jax.random.normal(key, (B, C, H, W), dtype=jnp.float32)

    gamma_init = jnp.float32(0.0)   # module __init__: gamma = zeros(1)
    beta_init = jnp.float32(0.5)    # module __init__: beta  = 0.5 * ones(1)
    gamma_chk = jnp.float32(0.3)    # non-trivial gamma so the attention branch contributes

    ref_chk = _reference(x, gamma_chk, beta_init)

    # 1) Exact-precision path (resident N tile) vs the pure-JAX reference.
    out_f32 = multi_order_cam(x, gamma_chk, beta_init, precision="highest")
    jax.block_until_ready(out_f32)
    assert jnp.allclose(out_f32, ref_chk, rtol=2e-3, atol=2e-3), "f32 path mismatch"

    # 2) Streamed (N-tiled, two-phase) path, forced via a small N tile cap.
    out_stream = multi_order_cam(
        x, gamma_chk, beta_init, precision="highest", max_n_tile=128
    )
    jax.block_until_ready(out_stream)
    assert jnp.allclose(out_stream, ref_chk, rtol=2e-3, atol=2e-3), "streamed path mismatch"

    # 3) Default bf16-MXU path (flash-attention-style tradeoff) — looser tolerance.
    out_bf16 = multi_order_cam(x, gamma_chk, beta_init, precision="bf16")
    jax.block_until_ready(out_bf16)
    assert jnp.allclose(out_bf16, ref_chk, rtol=5e-2, atol=5e-2), "bf16 path mismatch"

    # 4) Module-init parameters (gamma = 0) => output == input exactly.
    out_init = multi_order_cam(x, gamma_init, beta_init)
    jax.block_until_ready(out_init)
    assert jnp.allclose(out_init, x, rtol=1e-5, atol=1e-5), "gamma=0 identity mismatch"

    print("KERNEL_OK")
</pallas_src>

<mosaic_0001>
module attributes {stable_mosaic.version = 11 : i64} {
  func.func @kernel(%arg0: i32, %arg1: i32, %arg2: i32, %arg3: memref<2xf32, #tpu.memory_space<smem>>, %arg4: memref<2x4x256xf32, #tpu.memory_space<vmem>>, %arg5: memref<2x4x256xf32, #tpu.memory_space<vmem>>, %arg6: memref<2x4x4xf32, #tpu.memory_space<vmem>>, %arg7: memref<2x4xf32, #tpu.memory_space<vmem>>, %arg8: memref<2x4x4xf32, #tpu.memory_space<vmem>>) attributes {dimension_semantics = [#tpu.dimension_semantics<parallel>, #tpu.dimension_semantics<arbitrary>, #tpu.dimension_semantics<arbitrary>], iteration_bounds = array<i64: 1, 2, 1>, scalar_prefetch = 1 : i64, scratch_operands = 3 : i64, tpu.core_type = #tpu.core_type<tc>, window_params = [{transform_indices = @transform_0, window_bounds = array<i64: 2, 4, 256>}, {transform_indices = @transform_1, window_bounds = array<i64: 2, 4, 256>}]} {
    %c0 = arith.constant 0 : index
    %0 = memref.load %arg3[%c0] : memref<2xf32, #tpu.memory_space<smem>>
    %c1 = arith.constant 1 : index
    %1 = memref.load %arg3[%c1] : memref<2xf32, #tpu.memory_space<smem>>
    %c0_i32 = arith.constant 0 : i32
    %2 = arith.cmpi eq, %arg1, %c0_i32 : i32
    %c0_i32_0 = arith.constant 0 : i32
    %3 = arith.cmpi eq, %arg2, %c0_i32_0 : i32
    %4 = arith.andi %2, %3 : i1
    %5 = arith.extui %4 : i1 to i32
    %c0_i32_1 = arith.constant 0 : i32
    %6 = arith.cmpi ne, %5, %c0_i32_1 : i32
    scf.if %6 {
      %cst = arith.constant 0.000000e+00 : f32
      %18 = vector.broadcast %cst : f32 to vector<2x4x4xf32>
      %c0_8 = arith.constant 0 : index
      %c0_9 = arith.constant 0 : index
      %c0_10 = arith.constant 0 : index
      %19 = vector.load %arg6[%c0_8, %c0_9, %c0_10] : memref<2x4x4xf32, #tpu.memory_space<vmem>>, vector<2x4x4xf32>
      tpu.vector_store %arg6[%c0_8, %c0_9, %c0_10], %18 {strides = array<i32>} : memref<2x4x4xf32, #tpu.memory_space<vmem>>, vector<2x4x4xf32>,
      %cst_11 = arith.constant 0.000000e+00 : f32
      %20 = vector.broadcast %cst_11 : f32 to vector<2x4xf32>
      %c0_12 = arith.constant 0 : index
      %c0_13 = arith.constant 0 : index
      %21 = vector.load %arg7[%c0_12, %c0_13] : memref<2x4xf32, #tpu.memory_space<vmem>>, vector<2x4xf32>
      tpu.vector_store %arg7[%c0_12, %c0_13], %20 {strides = array<i32>} : memref<2x4xf32, #tpu.memory_space<vmem>>, vector<2x4xf32>,
    } else {
    }
    %c0_i32_2 = arith.constant 0 : i32
    %7 = arith.cmpi eq, %arg1, %c0_i32_2 : i32
    %8 = arith.extui %7 : i1 to i32
    %c0_i32_3 = arith.constant 0 : i32
    %9 = arith.cmpi ne, %8, %c0_i32_3 : i32
    scf.if %9 {
      %c0_8 = arith.constant 0 : index
      %c0_9 = arith.constant 0 : index
      %c0_10 = arith.constant 0 : index
      %18 = vector.load %arg4[%c0_8, %c0_9, %c0_10] : memref<2x4x256xf32, #tpu.memory_space<vmem>>, vector<2x4x256xf32>
      %c0_11 = arith.constant 0 : index
      %c0_12 = arith.constant 0 : index
      %c0_13 = arith.constant 0 : index
      %19 = vector.load %arg6[%c0_11, %c0_12, %c0_13] : memref<2x4x4xf32, #tpu.memory_space<vmem>>, vector<2x4x4xf32>
      "tpu.trace_start"() <{level = 10 : i32, message = "bcn,bdn->bcd"}> : () -> ()
      %cst = arith.constant dense<0.000000e+00> : vector<2x4x4xf32>
      %20 = tpu.matmul %18, %18, %cst {dimension_numbers = #tpu.dot_dimension_numbers<[2], [2], [1], [1], [0, 0, 0, 1, 1, 1], [0], [0]>} : vector<2x4x256xf32>, vector<2x4x256xf32>, vector<2x4x4xf32> -> vector<2x4x4xf32>
      "tpu.trace_stop"() : () -> ()
      %21 = arith.addf %19, %20 : vector<2x4x4xf32>
      %c0_14 = arith.constant 0 : index
      %c0_15 = arith.constant 0 : index
      %c0_16 = arith.constant 0 : index
      %22 = vector.load %arg6[%c0_14, %c0_15, %c0_16] : memref<2x4x4xf32, #tpu.memory_space<vmem>>, vector<2x4x4xf32>
      tpu.vector_store %arg6[%c0_14, %c0_15, %c0_16], %21 {strides = array<i32>} : memref<2x4x4xf32, #tpu.memory_space<vmem>>, vector<2x4x4xf32>,
      %c0_17 = arith.constant 0 : index
      %c0_18 = arith.constant 0 : index
      %23 = vector.load %arg7[%c0_17, %c0_18] : memref<2x4xf32, #tpu.memory_space<vmem>>, vector<2x4xf32>
      %cst_19 = arith.constant dense<0.000000e+00> : vector<2x4xf32>
      %24 = vector.multi_reduction <add>, %18, %cst_19 [2] : vector<2x4x256xf32> to vector<2x4xf32>
      %25 = arith.addf %23, %24 : vector<2x4xf32>
      %c0_20 = arith.constant 0 : index
      %c0_21 = arith.constant 0 : index
      %26 = vector.load %arg7[%c0_20, %c0_21] : memref<2x4xf32, #tpu.memory_space<vmem>>, vector<2x4xf32>
      tpu.vector_store %arg7[%c0_20, %c0_21], %25 {strides = array<i32>} : memref<2x4xf32, #tpu.memory_space<vmem>>, vector<2x4xf32>,
    } else {
    }
    %c1_i32 = arith.constant 1 : i32
    %10 = arith.cmpi eq, %arg1, %c1_i32 : i32
    %c0_i32_4 = arith.constant 0 : i32
    %11 = arith.cmpi eq, %arg2, %c0_i32_4 : i32
    %12 = arith.andi %10, %11 : i1
    %13 = arith.extui %12 : i1 to i32
    %c0_i32_5 = arith.constant 0 : i32
    %14 = arith.cmpi ne, %13, %c0_i32_5 : i32
    scf.if %14 {
      %c0_8 = arith.constant 0 : index
      %c0_9 = arith.constant 0 : index
      %c0_10 = arith.constant 0 : index
      %18 = vector.load %arg6[%c0_8, %c0_9, %c0_10] : memref<2x4x4xf32, #tpu.memory_space<vmem>>, vector<2x4x4xf32>
      %c0_11 = arith.constant 0 : index
      %c0_12 = arith.constant 0 : index
      %19 = vector.load %arg7[%c0_11, %c0_12] : memref<2x4xf32, #tpu.memory_space<vmem>>, vector<2x4xf32>
      %20 = vector.shape_cast %19 : vector<2x4xf32> to vector<2x4x1xf32>
      %21 = vector.shape_cast %19 : vector<2x4xf32> to vector<2x1x4xf32>
      %22 = vector.broadcast %20 : vector<2x4x1xf32> to vector<2x4x4xf32>
      %23 = vector.broadcast %21 : vector<2x1x4xf32> to vector<2x4x4xf32>
      %24 = arith.mulf %22, %23 : vector<2x4x4xf32>
      %cst = arith.constant 3.906250e-03 : f32
      %25 = vector.broadcast %cst : f32 to vector<2x4x4xf32>
      %26 = arith.mulf %24, %25 : vector<2x4x4xf32>
      %27 = arith.subf %18, %26 : vector<2x4x4xf32>
      %cst_13 = arith.constant 2.44140625E-4 : f32
      %28 = vector.broadcast %cst_13 : f32 to vector<2x4x4xf32>
      %29 = arith.mulf %27, %28 : vector<2x4x4xf32>
      %cst_14 = arith.constant dense<0xFF800000> : vector<2x4xf32>
      %30 = vector.multi_reduction <maximumf>, %29, %cst_14 [2] : vector<2x4x4xf32> to vector<2x4xf32>
      %31 = vector.shape_cast %30 : vector<2x4xf32> to vector<2x4x1xf32>
      %32 = vector.broadcast %31 : vector<2x4x1xf32> to vector<2x4x4xf32>
      %33 = arith.subf %29, %32 : vector<2x4x4xf32>
      %34 = math.exp %33 : vector<2x4x4xf32>
      %cst_15 = arith.constant dense<0.000000e+00> : vector<2x4xf32>
      %35 = vector.multi_reduction <add>, %34, %cst_15 [2] : vector<2x4x4xf32> to vector<2x4xf32>
      %36 = vector.shape_cast %35 : vector<2x4xf32> to vector<2x4x1xf32>
      %37 = tpu.reciprocal %36 {approx = true} : vector<2x4x1xf32> -> vector<2x4x1xf32>
      %38 = vector.broadcast %37 : vector<2x4x1xf32> to vector<2x4x4xf32>
      %39 = arith.mulf %34, %38 : vector<2x4x4xf32>
      %cst_16 = arith.constant dense<0x7F800000> : vector<2x4xf32>
      %40 = vector.multi_reduction <minimumf>, %18, %cst_16 [2] : vector<2x4x4xf32> to vector<2x4xf32>
      %41 = vector.shape_cast %40 : vector<2x4xf32> to vector<2x4x1xf32>
      %42 = vector.broadcast %41 : vector<2x4x1xf32> to vector<2x4x4xf32>
      %43 = arith.subf %42, %18 : vector<2x4x4xf32>
      %44 = math.exp %43 : vector<2x4x4xf32>
      %cst_17 = arith.constant dense<0.000000e+00> : vector<2x4xf32>
      %45 = vector.multi_reduction <add>, %44, %cst_17 [2] : vector<2x4x4xf32> to vector<2x4xf32>
      %46 = vector.shape_cast %45 : vector<2x4xf32> to vector<2x4x1xf32>
      %47 = tpu.reciprocal %46 {approx = true} : vector<2x4x1xf32> -> vector<2x4x1xf32>
      %48 = vector.broadcast %47 : vector<2x4x1xf32> to vector<2x4x4xf32>
      %49 = arith.mulf %44, %48 : vector<2x4x4xf32>
      %50 = vector.broadcast %1 : f32 to vector<2x4x4xf32>
      %51 = arith.mulf %50, %39 : vector<2x4x4xf32>
      %cst_18 = arith.constant 1.000000e+00 : f32
      %52 = arith.subf %cst_18, %1 : f32
      %53 = vector.broadcast %52 : f32 to vector<2x4x4xf32>
      %54 = arith.mulf %53, %49 : vector<2x4x4xf32>
      %55 = arith.addf %51, %54 : vector<2x4x4xf32>
      %c0_19 = arith.constant 0 : index
      %c0_20 = arith.constant 0 : index
      %c0_21 = arith.constant 0 : index
      %56 = vector.load %arg8[%c0_19, %c0_20, %c0_21] : memref<2x4x4xf32, #tpu.memory_space<vmem>>, vector<2x4x4xf32>
      tpu.vector_store %arg8[%c0_19, %c0_20, %c0_21], %55 {strides = array<i32>} : memref<2x4x4xf32, #tpu.memory_space<vmem>>, vector<2x4x4xf32>,
    } else {
    }
    %c1_i32_6 = arith.constant 1 : i32
    %15 = arith.cmpi eq, %arg1, %c1_i32_6 : i32
    %16 = arith.extui %15 : i1 to i32
    %c0_i32_7 = arith.constant 0 : i32
    %17 = arith.cmpi ne, %16, %c0_i32_7 : i32
    scf.if %17 {
      %c0_8 = arith.constant 0 : index
      %c0_9 = arith.constant 0 : index
      %c0_10 = arith.constant 0 : index
      %18 = vector.load %arg4[%c0_8, %c0_9, %c0_10] : memref<2x4x256xf32, #tpu.memory_space<vmem>>, vector<2x4x256xf32>
      %c0_11 = arith.constant 0 : index
      %c0_12 = arith.constant 0 : index
      %c0_13 = arith.constant 0 : index
      %19 = vector.load %arg8[%c0_11, %c0_12, %c0_13] : memref<2x4x4xf32, #tpu.memory_space<vmem>>, vector<2x4x4xf32>
      "tpu.trace_start"() <{level = 10 : i32, message = "bcd,bdn->bcn"}> : () -> ()
      %cst = arith.constant dense<0.000000e+00> : vector<2x4x256xf32>
      %20 = tpu.matmul %19, %18, %cst {dimension_numbers = #tpu.dot_dimension_numbers<[2], [1], [1], [2], [0, 0, 0, 1, 1, 2], [0], [0]>} : vector<2x4x4xf32>, vector<2x4x256xf32>, vector<2x4x256xf32> -> vector<2x4x256xf32>
      "tpu.trace_stop"() : () -> ()
      %21 = vector.broadcast %0 : f32 to vector<2x4x256xf32>
      %22 = arith.mulf %21, %20 : vector<2x4x256xf32>
      %23 = arith.addf %22, %18 : vector<2x4x256xf32>
      %c0_14 = arith.constant 0 : index
      %c0_15 = arith.constant 0 : index
      %c0_16 = arith.constant 0 : index
      %24 = vector.load %arg5[%c0_14, %c0_15, %c0_16] : memref<2x4x256xf32, #tpu.memory_space<vmem>>, vector<2x4x256xf32>
      tpu.vector_store %arg5[%c0_14, %c0_15, %c0_16], %23 {strides = array<i32>} : memref<2x4x256xf32, #tpu.memory_space<vmem>>, vector<2x4x256xf32>,
    } else {
    }
    return
  }
  func.func @transform_0(%arg0: i32, %arg1: i32, %arg2: i32, %arg3: memref<2xf32, #tpu.memory_space<smem>>) -> (i32, i32, i32) {
    %c0_i32 = arith.constant 0 : i32
    %c0_i32_0 = arith.constant 0 : i32
    return %arg0, %c0_i32, %arg2 : i32, i32, i32
  }
  func.func @transform_1(%arg0: i32, %arg1: i32, %arg2: i32, %arg3: memref<2xf32, #tpu.memory_space<smem>>) -> (i32, i32, i32) {
    %0 = arith.muli %arg1, %arg2 : i32
    %c0_i32 = arith.constant 0 : i32
    %c0_i32_0 = arith.constant 0 : i32
    return %arg0, %c0_i32, %0 : i32, i32, i32
  }
}

</mosaic_0001>

<llo_original>
// kernel: tpu_custom_call.1
$region0: #{tpu_custom_call.1}
  #allocation0 [shape = 'u32[]', space=smem, size = 0x4, offset = 0x4, fixed_abs, tag = 'smem constant byte address 0x4 - core index']
  #allocation1 [shape = 'u32[144,128]{1,0:T(1,128)}', space=vmem, size = 0x12000, scoped, tag = 'internal scratch']
  #allocation2 [shape = 'f32[2,4,4]{2,1,0:T(4,128)}', space=vmem, size = 0x1000, scoped, tag = 'scratch operand']
  #allocation3 [shape = 'f32[2,4]{1,0:T(2,128)}', space=vmem, size = 0x400, scoped, tag = 'scratch operand']
  #allocation4 [shape = 'f32[2,4,4]{2,1,0:T(4,128)}', space=vmem, size = 0x1000, scoped, tag = 'scratch operand']
  #allocation5 [shape = 's32[1]{0}', space=sflag, size = 0x4, scoped, tag = 'scoped memory for tpu_custom_call.1']
  #allocation6 [shape = 'u8[512]{0}', space=smem, size = 0x200, scoped, tag = 'prefetched SMEM operand 0']
  %s0 = inlined_call_operand.hbm [shape: f32[2], index: 0, kind: input, shape index: {}]
  %s1 = inlined_call_operand.hbm [shape: f32[2,4,256], index: 1, kind: input, shape index: {}]
  %s2 = inlined_call_operand.hbm [shape: f32[2,4,256], index: 2, kind: output, shape index: {}]
  %s3 = sld [smem:[#allocation0]]
  $region57: #{tpu_custom_call.1} parent=0
    _
  %s5 = ssub.s32 1, %s3
  %s6 = scalar_select 0, %s5, %s3
  %8 = dma.hbm_to_smem %s0, 16, [#allocation6], [#allocation5]
  %9 = dma.done [#allocation5], 16
  %10 = sfence
  $region1: #{tpu_custom_call.1} parent=0
    #allocation7 [shape = 'u8[8192]{0}', space=vmem, size = 0x2000, scoped, tag = 'input window, operand 1, single buffered']
    #allocation8 [shape = 's32[2]{0}', space=sflag, size = 0x8, scoped, tag = 'scoped memory for tpu_custom_call.1']
    #allocation9 [shape = 's32[2]{0}', space=sflag, size = 0x8, scoped, tag = 'scoped memory for tpu_custom_call.1']
    #allocation10 [shape = 'u8[16384]{0}', space=vmem, size = 0x4000, scoped, tag = 'output window, operand 0']
    %11 = vsyncpa [#allocation8], 0
    %12 = vsyncpa [#allocation9], 0
    %s13 = scalar_lea.sflag [#allocation9], 1
    %14 = vsyncpa %s13, 0
    loop: start=0, step=1, limit=4
    $region2: #{tpu_custom_call.1} parent=1 // loop_pre_header
      _
    $region3: #{tpu_custom_call.1} parent=1 // loop_header
      %s16 = sphi 0, %s20
      %p17 = scmp.ge.s32.totalorder %s16, 4
      %s23 = sphi 0, %s42
      %s24 = sphi 0, %s38
      %s25 = sphi 0, %s34
      %s26 = sphi 0, %s23
      %s27 = sphi 0, %s24
      %s28 = sphi 0, %s25
      %s29 = sphi 0, %s26
      %s30 = sphi 0, %s27
      %s31 = sphi 0, %s28
      %s47 = sphi 0, %s49
      %s50 = sphi 0, %s47
      %s51 = sphi 0, %s50
      %s67 = sphi 0, %s51
      %s77 = sphi 0, %s79
      %s80 = sphi 0, %s77
      %s81 = sphi 0, %s80
      %s97 = sphi 0, %s81
    $region4: #{tpu_custom_call.1} parent=1 // loop_header_branch
      %19 = sbr.rel (%p17) target = $region8
    $region5: #{tpu_custom_call.1} parent=1 // loop_body
      %s21 = ssub.s32 %s16, 1
      %s22 = ssub.s32 %s16, 2
      %s32 = sadd.s32 1, %s25
      %p33 = scmp.ge.s32.totalorder %s32, 1
      %s34 = scalar_select %p33, 0, %s32
      %s35 = sadd.s32 1, %s24
      %s36 = scalar_select %p33, %s35, %s24
      %p37 = scmp.ge.s32.totalorder %s36, 2
      %s38 = scalar_select %p37, 0, %s36
      %s39 = sadd.s32 1, %s23
      %s40 = scalar_select %p37, %s39, %s23
      %p41 = scmp.ge.s32.totalorder %s40, 1
      %s42 = scalar_select %p41, 0, %s40
      %s43 = ssub.s32 %s23, %s42
      %s44 = ssub.s32 %s25, %s34
      %s45 = sor.u32 %s43, %s44
      %p46 = scmp.eq.s32.totalorder %s45, 0
      %s48 = sadd.s32 %s47, 1
      %s49 = scalar_select %p46, %s47, %s48
      %p52 = pneg %p46
      %p53 = scmp.eq.s32.totalorder %s16, 1
      %p54 = por %p52, %p53
      %p55 = scmp.ne.s32.totalorder %s47, %s50
      %p56 = scmp.eq.s32.totalorder %s16, 0
      %p57 = por %p55, %p56
      %p58 = scmp.ne.s32.totalorder %s47, %s50
      %p59 = scmp.eq.s32.totalorder %s21, 1
      %p60 = por %p58, %p59
      %p61 = scmp.ne.s32.totalorder %s50, %s51
      %p62 = scmp.eq.s32.totalorder %s21, 0
      %p63 = por %p61, %p62
      %p64 = scmp.ne.s32.totalorder %s50, %s51
      %p65 = scmp.eq.s32.totalorder %s22, 1
      %p66 = por %p64, %p65
      %p68 = scmp.ne.s32.totalorder %s51, %s67
      %p69 = scmp.eq.s32.totalorder %s22, 0
      %p70 = por %p68, %p69
      %s71 = smul.u32 %s24, %s25
      %s72 = smul.u32 %s38, %s34
      %s73 = ssub.s32 %s23, %s42
      %s74 = ssub.s32 %s71, %s72
      %s75 = sor.u32 %s73, %s74
      %p76 = scmp.eq.s32.totalorder %s75, 0
      %s78 = sadd.s32 %s77, 1
      %s79 = scalar_select %p76, %s77, %s78
      %p82 = pneg %p76
      %p83 = scmp.eq.s32.totalorder %s16, 1
      %p84 = por %p82, %p83
      %p85 = scmp.ne.s32.totalorder %s77, %s80
      %p86 = scmp.eq.s32.totalorder %s16, 0
      %p87 = por %p85, %p86
      %p88 = scmp.ne.s32.totalorder %s77, %s80
      %p89 = scmp.eq.s32.totalorder %s21, 1
      %p90 = por %p88, %p89
      %p91 = scmp.ne.s32.totalorder %s80, %s81
      %p92 = scmp.eq.s32.totalorder %s21, 0
      %p93 = por %p91, %p92
      %p94 = scmp.ne.s32.totalorder %s80, %s81
      %p95 = scmp.eq.s32.totalorder %s22, 1
      %p96 = por %p94, %p95
      %p98 = scmp.ne.s32.totalorder %s81, %s97
      %p99 = scmp.eq.s32.totalorder %s22, 0
      %p100 = por %p98, %p99
      %p101 = scmp.le.s32.totalorder 1, %s16
      %p102 = scmp.lt.s32.totalorder %s16, 3
      %p103 = pnand %p101, %p102
      %p104 = pneg %p103
      // Predicated region
      $region9: #{tpu_custom_call.1} parent=5 // pred_check
        _
      $region10: #{tpu_custom_call.1} parent=5 // pred_check_branch
        %106 = sbr.rel (%p103) target = $region12
      $region11: #{tpu_custom_call.1} parent=5 // pred_region
        %s107 = ssub.s32 %s16, 1
        // Predicated region
        $region13: #{tpu_custom_call.1} parent=11 // pred_check
          %p108 = pneg %p63
        $region14: #{tpu_custom_call.1} parent=11 // pred_check_branch
          %110 = sbr.rel (%p108) target = $region16
        $region15: #{tpu_custom_call.1} parent=11 // pred_region
          %s111 = smul.u32 2, %s26
          %s112 = smul.u32 2, %s28
          %s114 = ssub.s32 256, 256
          %115 = vsyncadd [#allocation8], %s114
          %s116 = smul.addr %s111, 2
          %s117 = sadd.s32 %s112, %s116
          %s118 = smul.addr %s117, 64
          %s119 = scalar_lea.hbm %s1, %s118
          %s120 = sshll.u32 [#allocation7], 4
          %s121 = int_to_ptr.vmem [resolvable:$true] %s120
          %126 = dma.hbm_to_vmem [thread:$0]  %s119, 256, %s121, [#allocation8], 128, 128, 8
        $region16: #{tpu_custom_call.1} parent=11 // pred_fallthru
          _
      $region12: #{tpu_custom_call.1} parent=5 // pred_fallthru
        _
      %p127 = scmp.lt.s32.totalorder %s16, 2
      // Predicated region
      $region17: #{tpu_custom_call.1} parent=5 // pred_check
        %p128 = pneg %p127
      $region18: #{tpu_custom_call.1} parent=5 // pred_check_branch
        %130 = sbr.rel (%p128) target = $region20
      $region19: #{tpu_custom_call.1} parent=5 // pred_region
        _
      $region20: #{tpu_custom_call.1} parent=5 // pred_fallthru
        _
      %p131 = scmp.le.s32.totalorder 1, %s16
      %p132 = scmp.lt.s32.totalorder %s16, 3
      %p133 = pnand %p131, %p132
      %p134 = pneg %p133
      // Predicated region
      $region21: #{tpu_custom_call.1} parent=5 // pred_check
        _
      $region22: #{tpu_custom_call.1} parent=5 // pred_check_branch
        %136 = sbr.rel (%p133) target = $region24
      $region23: #{tpu_custom_call.1} parent=5 // pred_region
        %s137 = ssub.s32 %s16, 1
        // Predicated region
        $region25: #{tpu_custom_call.1} parent=23 // pred_check
          %p138 = pneg %p63
        $region26: #{tpu_custom_call.1} parent=23 // pred_check_branch
          %140 = sbr.rel (%p138) target = $region28
        $region27: #{tpu_custom_call.1} parent=23 // pred_region
          %141 = dma.done [#allocation8], 256
        $region28: #{tpu_custom_call.1} parent=23 // pred_fallthru
          _
        %p142 = pneg %p63
        %p143 = pneg %p60
        %p144 = pneg %p93
        %p145 = pneg %p90
        %s146 = sand.u32 %s80, 1
        %s147 = scalar_lea.sflag [#allocation9], %s146
        %s148 = sand.u32 %s80, 1
        %s149 = smul.addr %s148, 16
        %s150 = scalar_lea.vmem [#allocation10], %s149
        %s151 = smul.u32 2, %s26
        %s152 = smul.u32 2, %s28
        %s153 = smul.u32 %s27, %s28
        %s154 = smul.u32 2, %s26
        %s155 = smul.u32 2, %s153
        %s156 = sld [smem:[#allocation6]]
        %s157 = sld [smem:[#allocation6 + $0x1]]
        %p158 = scmp.eq.s32.totalorder %s27, 0
        %p159 = scmp.eq.s32.totalorder %s28, 0
        %p160 = pnand %p158, %p159
        %p161 = pneg %p160
        // Predicated region
        $region29: #{tpu_custom_call.1} parent=23 // pred_check
          _
        $region30: #{tpu_custom_call.1} parent=23 // pred_check_branch
          %163 = sbr.rel (%p160) target = $region32
        $region31: #{tpu_custom_call.1} parent=23 // pred_region
          %vm164 = vcmask 27648
          %165 = vst.msk [vmem:[#allocation2] sm:$0xf] %vm164, 0.0
          %166 = vst.msk [vmem:[#allocation2 + $0x4] sm:$0xf] %vm164, 0.0
          %vm167 = vcmask 25600
          %168 = vst.msk [vmem:[#allocation3] sm:$0x3] %vm167, 0.0
        $region32: #{tpu_custom_call.1} parent=23 // pred_fallthru
          _
        // Predicated region
        $region33: #{tpu_custom_call.1} parent=23 // pred_check
          %p169 = pneg %p158
        $region34: #{tpu_custom_call.1} parent=23 // pred_check_branch
          %171 = sbr.rel (%p169) target = $region36
        $region35: #{tpu_custom_call.1} parent=23 // pred_region
          %v172 = vld [vmem:[#allocation7] sm:$0xff]
          %v173 = vld [vmem:[#allocation7 + $0x8] sm:$0xff]
          %v174 = vld [vmem:[#allocation2] sm:$0xf]
          %v175 = vld [vmem:[#allocation2 + $0x4] sm:$0xf]
          %v177 = vcombine.high %v172, %v172
          %179 = vmatprep.subr.mxu0 %v177
          %180 = vmatpush1.xpose.msra.mxu0 %v172
          %181 = vmatprep.subr.mxu0 0.0
          %182 = vmatpush1.xpose.msra.mxu0 0.0
          %183 = vmatprep.subr.mxu0 0.0
          %184 = vmatpush1.xpose.msra.mxu0 0.0
          %185 = vmatprep.subr.mxu0 0.0
          %186 = vmatpush1.xpose.msra.mxu0 0.0
          %187 = vmatprep.subr.mxu0 0.0
          %188 = vmatpush1.xpose.msra.mxu0 0.0
          %189 = vmatprep.subr.mxu0 0.0
          %190 = vmatpush1.xpose.msra.mxu0 0.0
          %191 = vmatprep.subr.mxu0 0.0
          %192 = vmatpush1.xpose.msra.mxu0 0.0
          %193 = vmatprep.subr.mxu0 0.0
          %194 = vmatpush1.xpose.msra.mxu0 0.0
          %195 = vmatprep.subr.mxu0 0.0
          %196 = vmatpush1.xpose.msra.mxu0 0.0
          %197 = vmatprep.subr.mxu0 0.0
          %198 = vmatpush1.xpose.msra.mxu0 0.0
          %199 = vmatprep.subr.mxu0 0.0
          %200 = vmatpush1.xpose.msra.mxu0 0.0
          %201 = vmatprep.subr.mxu0 0.0
          %202 = vmatpush1.xpose.msra.mxu0 0.0
          %203 = vmatprep.subr.mxu0 0.0
          %204 = vmatpush1.xpose.msra.mxu0 0.0
          %205 = vmatprep.subr.mxu0 0.0
          %206 = vmatpush1.xpose.msra.mxu0 0.0
          %207 = vmatprep.subr.mxu0 0.0
          %208 = vmatpush1.xpose.msra.mxu0 0.0
          %209 = vmatprep.subr.mxu0 0.0
          %210 = vmatpush1.xpose.msra.mxu0 0.0
          %211 = vmatprep.subr.mxu0 0.0
          %212 = vmatpush1.xpose.msra.mxu0 0.0
          %213 = vmatprep.subr.mxu0 0.0
          %214 = vmatpush1.xpose.msra.mxu0 0.0
          %215 = vmatprep.subr.mxu0 0.0
          %216 = vmatpush1.xpose.msra.mxu0 0.0
          %217 = vmatprep.subr.mxu0 0.0
          %218 = vmatpush1.xpose.msra.mxu0 0.0
          %219 = vmatprep.subr.mxu0 0.0
          %220 = vmatpush1.xpose.msra.mxu0 0.0
          %221 = vmatprep.subr.mxu0 0.0
          %222 = vmatpush1.xpose.msra.mxu0 0.0
          %223 = vmatprep.subr.mxu0 0.0
          %224 = vmatpush1.xpose.msra.mxu0 0.0
          %225 = vmatprep.subr.mxu0 0.0
          %226 = vmatpush1.xpose.msra.mxu0 0.0
          %227 = vmatprep.subr.mxu0 0.0
          %228 = vmatpush1.xpose.msra.mxu0 0.0
          %229 = vmatprep.subr.mxu0 0.0
          %230 = vmatpush1.xpose.msra.mxu0 0.0
          %231 = vmatprep.subr.mxu0 0.0
          %232 = vmatpush1.xpose.msra.mxu0 0.0
          %233 = vmatprep.subr.mxu0 0.0
          %234 = vmatpush1.xpose.msra.mxu0 0.0
          %235 = vmatprep.subr.mxu0 0.0
          %236 = vmatpush1.xpose.msra.mxu0 0.0
          %237 = vmatprep.subr.mxu0 0.0
          %238 = vmatpush1.xpose.msra.mxu0 0.0
          %239 = vmatprep.subr.mxu0 0.0
          %240 = vmatpush1.xpose.msra.mxu0 0.0
          %241 = vmatprep.subr.mxu0 0.0
          %242 = vmatpush1.xpose.msra.mxu0 0.0
          %243 = vmatprep.mubr.f32.mxu0 %v177
          %244 = vmatmul.mubr.f32.gmra.mrb[0].mxu0 %v172
          %v245 = vpop.f32.mrb[0].mxu0
          %v246 = vadd.f32 0.0, %v245
          %v247 = vpop.f32.mrb[0].mxu0
          %248 = vdwg.mxu0
          %v250 = vcombine.high %v173, %v173
          %252 = vmatprep.subr.mxu0 %v250
          %253 = vmatpush1.xpose.msra.mxu0 %v173
          %254 = vmatprep.subr.mxu0 0.0
          %255 = vmatpush1.xpose.msra.mxu0 0.0
          %256 = vmatprep.subr.mxu0 0.0
          %257 = vmatpush1.xpose.msra.mxu0 0.0
          %258 = vmatprep.subr.mxu0 0.0
          %259 = vmatpush1.xpose.msra.mxu0 0.0
          %260 = vmatprep.subr.mxu0 0.0
          %261 = vmatpush1.xpose.msra.mxu0 0.0
          %262 = vmatprep.subr.mxu0 0.0
          %263 = vmatpush1.xpose.msra.mxu0 0.0
          %264 = vmatprep.subr.mxu0 0.0
          %265 = vmatpush1.xpose.msra.mxu0 0.0
          %266 = vmatprep.subr.mxu0 0.0
          %267 = vmatpush1.xpose.msra.mxu0 0.0
          %268 = vmatprep.subr.mxu0 0.0
          %269 = vmatpush1.xpose.msra.mxu0 0.0
          %270 = vmatprep.subr.mxu0 0.0
          %271 = vmatpush1.xpose.msra.mxu0 0.0
          %272 = vmatprep.subr.mxu0 0.0
          %273 = vmatpush1.xpose.msra.mxu0 0.0
          %274 = vmatprep.subr.mxu0 0.0
          %275 = vmatpush1.xpose.msra.mxu0 0.0
          %276 = vmatprep.subr.mxu0 0.0
          %277 = vmatpush1.xpose.msra.mxu0 0.0
          %278 = vmatprep.subr.mxu0 0.0
          %279 = vmatpush1.xpose.msra.mxu0 0.0
          %280 = vmatprep.subr.mxu0 0.0
          %281 = vmatpush1.xpose.msra.mxu0 0.0
          %282 = vmatprep.subr.mxu0 0.0
          %283 = vmatpush1.xpose.msra.mxu0 0.0
          %284 = vmatprep.subr.mxu0 0.0
          %285 = vmatpush1.xpose.msra.mxu0 0.0
          %286 = vmatprep.subr.mxu0 0.0
          %287 = vmatpush1.xpose.msra.mxu0 0.0
          %288 = vmatprep.subr.mxu0 0.0
          %289 = vmatpush1.xpose.msra.mxu0 0.0
          %290 = vmatprep.subr.mxu0 0.0
          %291 = vmatpush1.xpose.msra.mxu0 0.0
          %292 = vmatprep.subr.mxu0 0.0
          %293 = vmatpush1.xpose.msra.mxu0 0.0
          %294 = vmatprep.subr.mxu0 0.0
          %295 = vmatpush1.xpose.msra.mxu0 0.0
          %296 = vmatprep.subr.mxu0 0.0
          %297 = vmatpush1.xpose.msra.mxu0 0.0
          %298 = vmatprep.subr.mxu0 0.0
          %299 = vmatpush1.xpose.msra.mxu0 0.0
          %300 = vmatprep.subr.mxu0 0.0
          %301 = vmatpush1.xpose.msra.mxu0 0.0
          %302 = vmatprep.subr.mxu0 0.0
          %303 = vmatpush1.xpose.msra.mxu0 0.0
          %304 = vmatprep.subr.mxu0 0.0
          %305 = vmatpush1.xpose.msra.mxu0 0.0
          %306 = vmatprep.subr.mxu0 0.0
          %307 = vmatpush1.xpose.msra.mxu0 0.0
          %308 = vmatprep.subr.mxu0 0.0
          %309 = vmatpush1.xpose.msra.mxu0 0.0
          %310 = vmatprep.subr.mxu0 0.0
          %311 = vmatpush1.xpose.msra.mxu0 0.0
          %312 = vmatprep.subr.mxu0 0.0
          %313 = vmatpush1.xpose.msra.mxu0 0.0
          %314 = vmatprep.subr.mxu0 0.0
          %315 = vmatpush1.xpose.msra.mxu0 0.0
          %316 = vmatprep.mubr.f32.mxu0 %v250
          %317 = vmatmul.mubr.f32.gmra.mrb[0].mxu0 %v173
          %v318 = vpop.f32.mrb[0].mxu0
          %v319 = vadd.f32 0.0, %v318
          %v320 = vpop.f32.mrb[0].mxu0
          %321 = vdwg.mxu0
          %v322 = vadd.f32 %v174, %v246
          %v323 = vadd.f32 %v175, %v319
          %vm324 = vcmask 27648
          %325 = vst.msk [vmem:[#allocation2] sm:$0xf] %vm324, %v322
          %326 = vst.msk [vmem:[#allocation2 + $0x4] sm:$0xf] %vm324, %v323
          %v327 = vld [vmem:[#allocation3] sm:$0x3]
          %vm328 = vcmask 1043456
          %v329 = vsel %vm328, %v172, 0.0
          %v330 = vsel %vm328, %v177, 0.0
          %v331 = vadd.f32 %v329, %v330
          %332 = vadd.xlane.f32.xlu0 %v331
          %v333 = vpop.xlane.xlu0 %332
          %v334 = vsel %vm328, %v173, 0.0
          %v335 = vsel %vm328, %v250, 0.0
          %v336 = vadd.f32 %v334, %v335
          %337 = vadd.xlane.f32.xlu0 %v336
          %v338 = vpop.xlane.xlu0 %337
          %v341 = vlaneseq
          %v342 = vand.u32 %v341, 127
          %v343 = vlaneseq
          %v344 = vshrl.u32 %v343, 7
          %v345 = vsub.s32 %v342, %v344
          %v346 = vrot.slane %v333, %v345
          %v347 = vlaneseq
          %v348 = vshrl.u32 %v347, 7
          %v349 = vsub.s32 %v342, %v348
          %v350 = vrot.slane %v338, %v349
          %vm351 = vcmask 1041409
          %v352 = vsel %vm351, %v350, %v346
          %v354 = vadd.f32 %v327, %v352
          %vm355 = vcmask 25600
          %356 = vst.msk [vmem:[#allocation3] sm:$0x3] %vm355, %v354
        $region36: #{tpu_custom_call.1} parent=23 // pred_fallthru
          _
        %p357 = scmp.eq.s32.totalorder %s27, 1
        %p358 = pnand %p357, %p159
        %p359 = pneg %p358
        // Predicated region
        $region37: #{tpu_custom_call.1} parent=23 // pred_check
          _
        $region38: #{tpu_custom_call.1} parent=23 // pred_check_branch
          %361 = sbr.rel (%p358) target = $region40
        $region39: #{tpu_custom_call.1} parent=23 // pred_region
          %v362 = vld [vmem:[#allocation2] sm:$0xf]
          %v363 = vld [vmem:[#allocation2 + $0x4] sm:$0xf]
          %v364 = vld [vmem:[#allocation3] sm:$0x3]
          %v365 = vlaneseq
          %v366 = vshrl.u32 %v365, 7
          %v367 = vsub.s32 0, %v366
          %v368 = vrot.slane %v364, %v367
          %370 = vbcast.lane.b32.xlu0 %v368, 256
          %v371 = vpop.permute.xlu0 %370
          %v372 = vlaneseq
          %v373 = vshrl.u32 %v372, 7
          %v374 = vsub.s32 1, %v373
          %v375 = vrot.slane %v364, %v374
          %377 = vbcast.lane.b32.xlu0 %v375, 256
          %v378 = vpop.permute.xlu0 %377
          %v381 = vunpack.c.l.s4 1966171168
          %v382 = vunpack.c.0.s8 %v381
          %v383 = vlaneseq
          %v384 = vshrl.u32 %v383, 7
          %v385 = vsub.s32 %v382, %v384
          %v386 = vrot.slane %v364, %v385
          %v387 = vcombine.high %v386, %v386
          %v389 = vunpack.c.l.s4 1966171168
          %v390 = vunpack.c.0.s8 %v389
          %v391 = vlaneseq
          %v392 = vshrl.u32 %v391, 7
          %v393 = vsub.s32 %v390, %v392
          %v394 = vrot.slane %v386, %v393
          %v396 = vunpack.c.l.s4 1966171168
          %v397 = vunpack.c.0.s8 %v396
          %v398 = vlaneseq
          %v399 = vshrl.u32 %v398, 7
          %v400 = vsub.s32 %v397, %v399
          %v401 = vrot.slane %v387, %v400
          %v402 = vlaneseq
          %v403 = vshrl.u32 %v402, 7
          %v404 = vsub.s32 0, %v403
          %v405 = vrot.slane %v394, %v404
          %v406 = vlaneseq
          %v407 = vshrl.u32 %v406, 7
          %v408 = vsub.s32 0, %v407
          %v409 = vrot.slane %v401, %v408
          %v412 = vmul.f32 %v371, %v405
          %v413 = vmul.f32 %v378, %v409
          %v414 = vmul.f32 %v412, 0.00390625
          %v415 = vmul.f32 %v413, 0.00390625
          %v416 = vsub.f32 %v362, %v414
          %v417 = vsub.f32 %v363, %v415
          %v418 = vmul.f32 %v416, 0.00024414063
          %v419 = vmul.f32 %v417, 0.00024414063
          %vm420 = vcmask 27648
          %v421 = vsel %vm420, %v418, -inf
          %422 = vmax.xlane.f32.xlu0 %v421
          %v423 = vpop.xlane.xlu0 %422
          %v424 = vsel %vm420, %v419, -inf
          %425 = vmax.xlane.f32.xlu0 %v424
          %v426 = vpop.xlane.xlu0 %425
          %v427 = vsub.f32 %v418, %v423
          %v428 = vsub.f32 %v419, %v426
          %v429 = vmul.f32 %v427, 1.442695
          %v430 = vpow.pop %v429
          %v431 = vmul.f32 %v428, 1.442695
          %v432 = vpow.pop %v431
          %v433 = vsel %vm420, %v430, 0.0
          %434 = vadd.xlane.f32.xlu0 %v433
          %v435 = vpop.xlane.xlu0 %434
          %v436 = vsel %vm420, %v432, 0.0
          %437 = vadd.xlane.f32.xlu0 %v436
          %v438 = vpop.xlane.xlu0 %437
          %v439 = vrcp.pop %v435
          %v440 = vrcp.pop %v438
          %v441 = vmul.f32 %v430, %v439
          %v442 = vmul.f32 %v432, %v440
          %v443 = vsel %vm420, %v362, inf
          %444 = vmin.xlane.f32.xlu0 %v443
          %v445 = vpop.xlane.xlu0 %444
          %v446 = vsel %vm420, %v363, inf
          %447 = vmin.xlane.f32.xlu0 %v446
          %v448 = vpop.xlane.xlu0 %447
          %v449 = vsub.f32 %v445, %v362
          %v450 = vsub.f32 %v448, %v363
          %v451 = vmul.f32 %v449, 1.442695
          %v452 = vpow.pop %v451
          %v453 = vmul.f32 %v450, 1.442695
          %v454 = vpow.pop %v453
          %v455 = vsel %vm420, %v452, 0.0
          %456 = vadd.xlane.f32.xlu0 %v455
          %v457 = vpop.xlane.xlu0 %456
          %v458 = vsel %vm420, %v454, 0.0
          %459 = vadd.xlane.f32.xlu0 %v458
          %v460 = vpop.xlane.xlu0 %459
          %v461 = vrcp.pop %v457
          %v462 = vrcp.pop %v460
          %v463 = vmul.f32 %v452, %v461
          %v464 = vmul.f32 %v454, %v462
          %v465 = vstv %s157
          %v466 = vmul.f32 %v465, %v441
          %v467 = vmul.f32 %v465, %v442
          %s468 = ssub.f32 1.0, %s157
          %v469 = vstv %s468
          %v470 = vmul.f32 %v469, %v463
          %v471 = vmul.f32 %v469, %v464
          %v472 = vadd.f32 %v466, %v470
          %v473 = vadd.f32 %v467, %v471
          %474 = vst.msk [vmem:[#allocation4] sm:$0xf] %vm420, %v472
          %475 = vst.msk [vmem:[#allocation4 + $0x4] sm:$0xf] %vm420, %v473
        $region40: #{tpu_custom_call.1} parent=23 // pred_fallthru
          _
        // Predicated region
        $region41: #{tpu_custom_call.1} parent=23 // pred_check
          %p476 = pneg %p357
        $region42: #{tpu_custom_call.1} parent=23 // pred_check_branch
          %478 = sbr.rel (%p476) target = $region44
        $region43: #{tpu_custom_call.1} parent=23 // pred_region
          %v479 = vld [vmem:[#allocation7] sm:$0xff]
          %v480 = vld [vmem:[#allocation7 + $0x8] sm:$0xff]
          %v481 = vld [vmem:[#allocation4] sm:$0xf]
          %v482 = vld [vmem:[#allocation4 + $0x4] sm:$0xf]
          %v484 = vcombine.high %v479, %v479
          %vm485 = vcmask 31744
          %v487 = vsel %vm485, %v481, 0
          %vm489 = vcmask 1043456
          %v490 = vsel %vm489, %v479, 0
          %v492 = vsel %vm489, %v484, 0
          %494 = vmatprep.subr.mxu0 %v492
          %495 = vmatpush1.msra.mxu0 %v490
          %496 = vmatprep.subr.mxu0 0.0
          %497 = vmatpush1.msra.mxu0 0.0
          %498 = vmatprep.subr.mxu0 0.0
          %499 = vmatpush1.msra.mxu0 0.0
          %500 = vmatprep.subr.mxu0 0.0
          %501 = vmatpush1.msra.mxu0 0.0
          %502 = vmatprep.subr.mxu0 0.0
          %503 = vmatpush1.msra.mxu0 0.0
          %504 = vmatprep.subr.mxu0 0.0
          %505 = vmatpush1.msra.mxu0 0.0
          %506 = vmatprep.subr.mxu0 0.0
          %507 = vmatpush1.msra.mxu0 0.0
          %508 = vmatprep.subr.mxu0 0.0
          %509 = vmatpush1.msra.mxu0 0.0
          %510 = vmatprep.subr.mxu0 0.0
          %511 = vmatpush1.msra.mxu0 0.0
          %512 = vmatprep.subr.mxu0 0.0
          %513 = vmatpush1.msra.mxu0 0.0
          %514 = vmatprep.subr.mxu0 0.0
          %515 = vmatpush1.msra.mxu0 0.0
          %516 = vmatprep.subr.mxu0 0.0
          %517 = vmatpush1.msra.mxu0 0.0
          %518 = vmatprep.subr.mxu0 0.0
          %519 = vmatpush1.msra.mxu0 0.0
          %520 = vmatprep.subr.mxu0 0.0
          %521 = vmatpush1.msra.mxu0 0.0
          %522 = vmatprep.subr.mxu0 0.0
          %523 = vmatpush1.msra.mxu0 0.0
          %524 = vmatprep.subr.mxu0 0.0
          %525 = vmatpush1.msra.mxu0 0.0
          %526 = vmatprep.subr.mxu0 0.0
          %527 = vmatpush1.msra.mxu0 0.0
          %528 = vmatprep.subr.mxu0 0.0
          %529 = vmatpush1.msra.mxu0 0.0
          %530 = vmatprep.subr.mxu0 0.0
          %531 = vmatpush1.msra.mxu0 0.0
          %532 = vmatprep.subr.mxu0 0.0
          %533 = vmatpush1.msra.mxu0 0.0
          %534 = vmatprep.subr.mxu0 0.0
          %535 = vmatpush1.msra.mxu0 0.0
          %536 = vmatprep.subr.mxu0 0.0
          %537 = vmatpush1.msra.mxu0 0.0
          %538 = vmatprep.subr.mxu0 0.0
          %539 = vmatpush1.msra.mxu0 0.0
          %540 = vmatprep.subr.mxu0 0.0
          %541 = vmatpush1.msra.mxu0 0.0
          %542 = vmatprep.subr.mxu0 0.0
          %543 = vmatpush1.msra.mxu0 0.0
          %544 = vmatprep.subr.mxu0 0.0
          %545 = vmatpush1.msra.mxu0 0.0
          %546 = vmatprep.subr.mxu0 0.0
          %547 = vmatpush1.msra.mxu0 0.0
          %548 = vmatprep.subr.mxu0 0.0
          %549 = vmatpush1.msra.mxu0 0.0
          %550 = vmatprep.subr.mxu0 0.0
          %551 = vmatpush1.msra.mxu0 0.0
          %552 = vmatprep.subr.mxu0 0.0
          %553 = vmatpush1.msra.mxu0 0.0
          %554 = vmatprep.subr.mxu0 0.0
          %555 = vmatpush1.msra.mxu0 0.0
          %556 = vmatprep.subr.mxu0 0.0
          %557 = vmatpush1.msra.mxu0 0.0
          %558 = vmatprep.mubr.f32.mxu0 0.0
          %559 = vmatmul.mubr.f32.gmra.mrb[0].mxu0 %v487
          %v560 = vpop.f32.mrb[0].mxu0
          %v561 = vadd.f32 0.0, %v560
          %v562 = vpop.f32.mrb[0].mxu0
          %v563 = vadd.f32 0.0, %v562
          %564 = vdwg.mxu0
          %v566 = vcombine.high %v480, %v480
          %v568 = vsel %vm485, %v482, 0
          %v570 = vsel %vm489, %v480, 0
          %v572 = vsel %vm489, %v566, 0
          %574 = vmatprep.subr.mxu0 %v572
          %575 = vmatpush1.msra.mxu0 %v570
          %576 = vmatprep.subr.mxu0 0.0
          %577 = vmatpush1.msra.mxu0 0.0
          %578 = vmatprep.subr.mxu0 0.0
          %579 = vmatpush1.msra.mxu0 0.0
          %580 = vmatprep.subr.mxu0 0.0
          %581 = vmatpush1.msra.mxu0 0.0
          %582 = vmatprep.subr.mxu0 0.0
          %583 = vmatpush1.msra.mxu0 0.0
          %584 = vmatprep.subr.mxu0 0.0
          %585 = vmatpush1.msra.mxu0 0.0
          %586 = vmatprep.subr.mxu0 0.0
          %587 = vmatpush1.msra.mxu0 0.0
          %588 = vmatprep.subr.mxu0 0.0
          %589 = vmatpush1.msra.mxu0 0.0
          %590 = vmatprep.subr.mxu0 0.0
          %591 = vmatpush1.msra.mxu0 0.0
          %592 = vmatprep.subr.mxu0 0.0
          %593 = vmatpush1.msra.mxu0 0.0
          %594 = vmatprep.subr.mxu0 0.0
          %595 = vmatpush1.msra.mxu0 0.0
          %596 = vmatprep.subr.mxu0 0.0
          %597 = vmatpush1.msra.mxu0 0.0
          %598 = vmatprep.subr.mxu0 0.0
          %599 = vmatpush1.msra.mxu0 0.0
          %600 = vmatprep.subr.mxu0 0.0
          %601 = vmatpush1.msra.mxu0 0.0
          %602 = vmatprep.subr.mxu0 0.0
          %603 = vmatpush1.msra.mxu0 0.0
          %604 = vmatprep.subr.mxu0 0.0
          %605 = vmatpush1.msra.mxu0 0.0
          %606 = vmatprep.subr.mxu0 0.0
          %607 = vmatpush1.msra.mxu0 0.0
          %608 = vmatprep.subr.mxu0 0.0
          %609 = vmatpush1.msra.mxu0 0.0
          %610 = vmatprep.subr.mxu0 0.0
          %611 = vmatpush1.msra.mxu0 0.0
          %612 = vmatprep.subr.mxu0 0.0
          %613 = vmatpush1.msra.mxu0 0.0
          %614 = vmatprep.subr.mxu0 0.0
          %615 = vmatpush1.msra.mxu0 0.0
          %616 = vmatprep.subr.mxu0 0.0
          %617 = vmatpush1.msra.mxu0 0.0
          %618 = vmatprep.subr.mxu0 0.0
          %619 = vmatpush1.msra.mxu0 0.0
          %620 = vmatprep.subr.mxu0 0.0
          %621 = vmatpush1.msra.mxu0 0.0
          %622 = vmatprep.subr.mxu0 0.0
          %623 = vmatpush1.msra.mxu0 0.0
          %624 = vmatprep.subr.mxu0 0.0
          %625 = vmatpush1.msra.mxu0 0.0
          %626 = vmatprep.subr.mxu0 0.0
          %627 = vmatpush1.msra.mxu0 0.0
          %628 = vmatprep.subr.mxu0 0.0
          %629 = vmatpush1.msra.mxu0 0.0
          %630 = vmatprep.subr.mxu0 0.0
          %631 = vmatpush1.msra.mxu0 0.0
          %632 = vmatprep.subr.mxu0 0.0
          %633 = vmatpush1.msra.mxu0 0.0
          %634 = vmatprep.subr.mxu0 0.0
          %635 = vmatpush1.msra.mxu0 0.0
          %636 = vmatprep.subr.mxu0 0.0
          %637 = vmatpush1.msra.mxu0 0.0
          %638 = vmatprep.mubr.f32.mxu0 0.0
          %639 = vmatmul.mubr.f32.gmra.mrb[0].mxu0 %v568
          %v640 = vpop.f32.mrb[0].mxu0
          %v641 = vadd.f32 0.0, %v640
          %v642 = vpop.f32.mrb[0].mxu0
          %v643 = vadd.f32 0.0, %v642
          %644 = vdwg.mxu0
          %v645 = vstv %s156
          %v646 = vmul.f32 %v645, %v561
          %v647 = vmul.f32 %v645, %v563
          %v648 = vmul.f32 %v645, %v641
          %v649 = vmul.f32 %v645, %v643
          %v652 = vadd.f32 %v646, %v479
          %v653 = vadd.f32 %v647, %v484
          %v654 = vadd.f32 %v648, %v480
          %v655 = vadd.f32 %v649, %v566
          %v660 = vcombine.low %v652, %v653
          %v661 = vcombine.low %v654, %v655
          %664 = vst [vmem:[%s150] sm:$0xff] %v660
          %665 = vst [vmem:[%s150 + $0x8] sm:$0xff] %v661
        $region44: #{tpu_custom_call.1} parent=23 // pred_fallthru
          _
        %s666 = sand.u32 %s80, 1
        %s667 = scalar_lea.sflag [#allocation9], %s666
        %s668 = sand.u32 %s80, 1
        %s669 = smul.addr %s668, 16
        %s670 = scalar_lea.vmem [#allocation10], %s669
        // Predicated region
        $region45: #{tpu_custom_call.1} parent=23 // pred_check
          %p671 = pneg %p90
        $region46: #{tpu_custom_call.1} parent=23 // pred_check_branch
          %673 = sbr.rel (%p671) target = $region48
        $region47: #{tpu_custom_call.1} parent=23 // pred_region
          %s674 = smul.u32 %s27, %s28
          %s675 = smul.u32 2, %s26
          %s676 = smul.u32 2, %s674
          %s678 = ssub.s32 256, 256
          %679 = vsyncadd %s667, %s678
          %s680 = smul.addr %s675, 2
          %s681 = sadd.s32 %s676, %s680
          %s682 = smul.addr %s681, 64
          %s683 = scalar_lea.hbm %s2, %s682
          %s684 = sshll.u32 %s670, 4
          %s685 = int_to_ptr.vmem [resolvable:$true] %s684
          %690 = dma.vmem_to_hbm [thread:$0]  %s685, 256, %s683, %s667, 128, 128, 8
        $region48: #{tpu_custom_call.1} parent=23 // pred_fallthru
          _
      $region24: #{tpu_custom_call.1} parent=5 // pred_fallthru
        _
      %p691 = scmp.le.s32.totalorder 2, %s16
      // Predicated region
      $region49: #{tpu_custom_call.1} parent=5 // pred_check
        %p692 = pneg %p691
      $region50: #{tpu_custom_call.1} parent=5 // pred_check_branch
        %694 = sbr.rel (%p692) target = $region52
      $region51: #{tpu_custom_call.1} parent=5 // pred_region
        %s695 = ssub.s32 %s16, 2
        // Predicated region
        $region53: #{tpu_custom_call.1} parent=51 // pred_check
          %p696 = pneg %p96
        $region54: #{tpu_custom_call.1} parent=51 // pred_check_branch
          %698 = sbr.rel (%p696) target = $region56
        $region55: #{tpu_custom_call.1} parent=51 // pred_region
          %s699 = sand.u32 %s81, 1
          %s700 = scalar_lea.sflag [#allocation9], %s699
          %s701 = sand.u32 %s81, 1
          %s702 = smul.addr %s701, 16
          %s703 = scalar_lea.vmem [#allocation10], %s702
          %704 = dma.done %s700, 256
        $region56: #{tpu_custom_call.1} parent=51 // pred_fallthru
          _
      $region52: #{tpu_custom_call.1} parent=5 // pred_fallthru
        _
    $region6: #{tpu_custom_call.1} parent=1 // loop_footer
      %s20 = sadd.s32 1, %s16
    $region7: #{tpu_custom_call.1} parent=1 // loop_footer_branch
      %15 = sbr.rel target = $region3
    $region8: #{tpu_custom_call.1} parent=1 // loop_exit
      _
    %705 = vsyncpa [#allocation8], 1
    %s706 = scalar_lea.sflag [#allocation8], 1
    %707 = vsyncpa %s706, 1
    %708 = vsyncpa [#allocation9], 1
    %s709 = scalar_lea.sflag [#allocation9], 1
    %710 = vsyncpa %s709, 1

</llo_original>
